<compile_context>
chip_gen: v6e
topology: v6e:2x2x1
jax: 0.10.0
libtpu: 0.0.40
codegen_flags: <defaults>
</compile_context>

<pallas_src>
import functools

import jax
import jax.numpy as jnp
from jax.experimental import pallas as pl
from jax.experimental.pallas import tpu as pltpu

VMEM_LIMIT_BYTES = 32 * 1024 * 1024  # raise v5e's 16 MiB default scoped limit


def _round_up(x, m):
    return (x + m - 1) // m * m


def _pad2(a, rows, cols):
    return jnp.pad(a, ((0, rows - a.shape[0]), (0, cols - a.shape[1])))


def _choose_tiles(n):
    """Return (n_pad, tm, tk): padded node count, row tile, A_hat K tile."""
    if n <= 256:
        n_pad = _round_up(n, 16)     # bf16 sublane packing friendly
        return n_pad, n_pad, n_pad   # single block; tk == full dim is legal
    n_pad = _round_up(n, 256)
    return n_pad, 256, 256


# ----------------------------------------------------------------------------
# Kernels
# ----------------------------------------------------------------------------
def linear_kernel(x_ref, w_ref, b_ref, o_ref, *, apply_sigmoid):
    # [tm, Fin] (bf16) @ [Fin, Fout] (bf16) -> f32, + f32 bias
    y = jnp.dot(x_ref[...], w_ref[...], preferred_element_type=jnp.float32)
    y = y + b_ref[...]
    if apply_sigmoid:
        y = jax.nn.sigmoid(y)
    o_ref[...] = y.astype(o_ref.dtype)


def agg_kernel(a_ref, hw_ref, b_ref, o_ref, acc_ref):
    # out[i-block] = sum_k A_hat[i-block, k-block] @ HW[k-block] + bias
    k = pl.program_id(1)

    @pl.when(k == 0)
    def _():
        acc_ref[...] = jnp.zeros_like(acc_ref)

    acc_ref[...] += jnp.dot(a_ref[...], hw_ref[...],
                            preferred_element_type=jnp.float32)

    @pl.when(k == pl.num_programs(1) - 1)
    def _():
        o_ref[...] = (acc_ref[...] + b_ref[...]).astype(o_ref.dtype)


# ----------------------------------------------------------------------------
# pallas_call wrappers
# ----------------------------------------------------------------------------
def _linear(x, w, b, *, out_dtype, apply_sigmoid, tm):
    n_pad, fin = x.shape
    fout = w.shape[1]
    kernel = functools.partial(linear_kernel, apply_sigmoid=apply_sigmoid)
    return pl.pallas_call(
        kernel,
        out_shape=jax.ShapeDtypeStruct((n_pad, fout), out_dtype),
        grid=(n_pad // tm,),
        in_specs=[
            pl.BlockSpec((tm, fin), lambda i: (i, 0)),
            pl.BlockSpec((fin, fout), lambda i: (0, 0)),
            pl.BlockSpec((1, fout), lambda i: (0, 0)),
        ],
        out_specs=pl.BlockSpec((tm, fout), lambda i: (i, 0)),
        compiler_params=pltpu.CompilerParams(
            dimension_semantics=("parallel",),
            vmem_limit_bytes=VMEM_LIMIT_BYTES),
    )(x, w, b)


def _aggregate(a_hat, hw, b, *, out_dtype, tm, tk):
    n_pad = a_hat.shape[0]
    h = hw.shape[1]
    return pl.pallas_call(
        agg_kernel,
        out_shape=jax.ShapeDtypeStruct((n_pad, h), out_dtype),
        grid=(n_pad // tm, n_pad // tk),
        in_specs=[
            pl.BlockSpec((tm, tk), lambda i, k: (i, k)),
            pl.BlockSpec((tk, h), lambda i, k: (k, 0)),
            pl.BlockSpec((1, h), lambda i, k: (0, 0)),
        ],
        out_specs=pl.BlockSpec((tm, h), lambda i, k: (i, 0)),
        scratch_shapes=[pltpu.VMEM((tm, h), jnp.float32)],
        compiler_params=pltpu.CompilerParams(
            dimension_semantics=("parallel", "arbitrary"),
            vmem_limit_bytes=VMEM_LIMIT_BYTES),
    )(a_hat, hw, b)


# ----------------------------------------------------------------------------
# Dense normalized adjacency (PyG GCN normalization, add self loops)
# ----------------------------------------------------------------------------
def build_normalized_adj(edge_index, edge_attr, num_nodes):
    src = edge_index[0]
    dst = edge_index[1]
    loop = jnp.arange(num_nodes, dtype=src.dtype)
    src = jnp.concatenate([src, loop])
    dst = jnp.concatenate([dst, loop])
    w = jnp.concatenate([edge_attr.astype(jnp.float32),
                         jnp.ones((num_nodes,), jnp.float32)])

    deg = jnp.zeros((num_nodes,), jnp.float32).at[dst].add(w)
    deg_inv_sqrt = jnp.where(deg > 0, 1.0 / jnp.sqrt(deg), 0.0)
    norm = deg_inv_sqrt[src] * w * deg_inv_sqrt[dst]

    # A_hat[i, j] accumulates norm of edges j -> i, so aggregation is A_hat @ X
    return jnp.zeros((num_nodes, num_nodes), jnp.float32).at[dst, src].add(norm)


# ----------------------------------------------------------------------------
# Forward pass
# ----------------------------------------------------------------------------
def simple_gcn_forward(x, edge_index, edge_attr, params):
    w1, b1, wg, bg, w2, b2 = params
    n, in_dim = x.shape
    hidden = w1.shape[1]
    out_dim = w2.shape[1]
    n_layers = wg.shape[0]

    n_pad, tm, tk = _choose_tiles(n)
    din_p = _round_up(in_dim, 128)
    h_p = _round_up(hidden, 128)
    dout_p = _round_up(out_dim, 128)

    # Padded bf16 operands (zero padding keeps the math exact; padded
    # rows/cols never contribute to real nodes and are sliced off at the end).
    a_hat = _pad2(build_normalized_adj(edge_index, edge_attr, n),
                  n_pad, n_pad).astype(jnp.bfloat16)
    x_p = _pad2(x, n_pad, din_p).astype(jnp.bfloat16)
    zero_h_bias = jnp.zeros((1, h_p), jnp.float32)

    if n_layers == 0:
        h = _linear(x_p, _pad2(w1, din_p, h_p).astype(jnp.bfloat16),
                    _pad2(b1, 1, h_p), out_dtype=jnp.bfloat16,
                    apply_sigmoid=False, tm=tm)
    else:
        # Fold fc1 into the first GCNConv linear transform (f32 host precompute)
        w_eff = w1 @ wg[0]          # [in, hidden]
        b_eff = b1 @ wg[0]          # [1, hidden]
        hw = _linear(x_p, _pad2(w_eff, din_p, h_p).astype(jnp.bfloat16),
                     _pad2(b_eff, 1, h_p), out_dtype=jnp.bfloat16,
                     apply_sigmoid=False, tm=tm)
        h = _aggregate(a_hat, hw, _pad2(bg[0], 1, h_p),
                       out_dtype=jnp.bfloat16, tm=tm, tk=tk)
        for layer in range(1, n_layers):
            hw = _linear(h, _pad2(wg[layer], h_p, h_p).astype(jnp.bfloat16),
                         zero_h_bias, out_dtype=jnp.bfloat16,
                         apply_sigmoid=False, tm=tm)
            h = _aggregate(a_hat, hw, _pad2(bg[layer], 1, h_p),
                           out_dtype=jnp.bfloat16, tm=tm, tk=tk)

    # fc2 + sigmoid, lane-padded [n_pad, dout_p] output, then slice to real size
    y = _linear(h, _pad2(w2, h_p, dout_p).astype(jnp.bfloat16),
                _pad2(b2, 1, dout_p), out_dtype=jnp.float32,
                apply_sigmoid=True, tm=tm)
    return y[:n, :out_dim]


# ----------------------------------------------------------------------------
# Deterministic parameter init (PyTorch-Linear-style uniform, seeded)
# ----------------------------------------------------------------------------
def init_params(key, input_dim, hidden_dim, output_dim, n_mp_layers):
    ks = jax.random.split(key, 6)

    def uni(k, shape, fan_in):
        bound = 1.0 / jnp.sqrt(jnp.float32(fan_in))
        return jax.random.uniform(k, shape, jnp.float32, -bound, bound)

    # Stored already transposed so the kernels do X @ W (== X @ W_torch.T)
    w1 = uni(ks[0], (input_dim, hidden_dim), input_dim)
    b1 = uni(ks[1], (1, hidden_dim), input_dim)
    wg = uni(ks[2], (n_mp_layers, hidden_dim, hidden_dim), hidden_dim)
    bg = uni(ks[3], (n_mp_layers, 1, hidden_dim), hidden_dim)
    w2 = uni(ks[4], (hidden_dim, output_dim), hidden_dim)
    b2 = uni(ks[5], (1, output_dim), hidden_dim)
    return w1, b1, wg, bg, w2, b2


# ----------------------------------------------------------------------------
# Pure-JAX f32 reference for a correctness check
# ----------------------------------------------------------------------------
def reference_forward(x, edge_index, edge_attr, params):
    w1, b1, wg, bg, w2, b2 = params
    a_hat = build_normalized_adj(edge_index, edge_attr, x.shape[0])
    h = x @ w1 + b1
    for layer in range(wg.shape[0]):
        h = a_hat @ (h @ wg[layer]) + bg[layer]
    return jax.nn.sigmoid(h @ w2 + b2)


if __name__ == "__main__":
    INPUT_DIM, HIDDEN_DIM, OUTPUT_DIM, N_MP_LAYERS = 8, 32, 4, 2
    N_NODES, N_EDGES = 16, 40

    key = jax.random.PRNGKey(0)
    k_x, k_ei, k_ea, k_p = jax.random.split(key, 4)

    x = jax.random.normal(k_x, (N_NODES, INPUT_DIM), jnp.float32)
    edge_index = jax.random.randint(k_ei, (2, N_EDGES), 0, N_NODES, jnp.int32)
    edge_attr = jax.random.uniform(k_ea, (N_EDGES,), jnp.float32, 0.1, 1.0)

    params = init_params(k_p, INPUT_DIM, HIDDEN_DIM, OUTPUT_DIM, N_MP_LAYERS)

    fwd = jax.jit(simple_gcn_forward)
    y = jax.block_until_ready(fwd(x, edge_index, edge_attr, params))

    y_ref = reference_forward(x, edge_index, edge_attr, params)
    assert y.shape == (N_NODES, OUTPUT_DIM)
    max_err = float(jnp.max(jnp.abs(y - y_ref)))
    assert jnp.allclose(y, y_ref, atol=3e-2, rtol=3e-2), max_err

    print("KERNEL_OK")
</pallas_src>

<mosaic_0001>
module attributes {stable_mosaic.version = 11 : i64} {
  func.func private @main(%arg0: i32) attributes {dimension_semantics = [#tpu.dimension_semantics<core_parallel>], iteration_bounds = array<i64: 2>, tpu.core_type = #tpu.core_type<sc_scalar_subcore>, window_params = []} {
    return
  }
}

module attributes {stable_mosaic.version = 11 : i64} {
  func.func private @main(%arg0: i32) attributes {dimension_semantics = [#tpu.dimension_semantics<core_parallel>], iteration_bounds = array<i64: 2>, tpu.core_type = #tpu.core_type<sc_scalar_subcore>, window_params = []} {
    return
  }
}

module attributes {stable_mosaic.version = 11 : i64} {
  func.func @linear_kernel(%arg0: i32, %arg1: memref<16x128xbf16, #tpu.memory_space<vmem>>, %arg2: memref<128x128xbf16, #tpu.memory_space<vmem>>, %arg3: memref<1x128xf32, #tpu.memory_space<vmem>>, %arg4: memref<16x128xbf16, #tpu.memory_space<vmem>>) attributes {dimension_semantics = [#tpu.dimension_semantics<parallel>], iteration_bounds = array<i64: 1>, scalar_prefetch = 0 : i64, scratch_operands = 0 : i64, tpu.core_type = #tpu.core_type<tc>, window_params = [{transform_indices = @transform_0, window_bounds = array<i64: 16, 128>}, {pipeline_mode = #tpu.pipeline_mode<synchronous>, transform_indices = @transform_1, window_bounds = array<i64: 128, 128>}, {pipeline_mode = #tpu.pipeline_mode<synchronous>, transform_indices = @transform_2, window_bounds = array<i64: 1, 128>}, {transform_indices = @transform_3, window_bounds = array<i64: 16, 128>}]} {
    %c0 = arith.constant 0 : index
    %c0_0 = arith.constant 0 : index
    %0 = vector.load %arg1[%c0, %c0_0] : memref<16x128xbf16, #tpu.memory_space<vmem>>, vector<16x128xbf16>
    %c0_1 = arith.constant 0 : index
    %c0_2 = arith.constant 0 : index
    %1 = vector.load %arg2[%c0_1, %c0_2] : memref<128x128xbf16, #tpu.memory_space<vmem>>, vector<128x128xbf16>
    %cst = arith.constant dense<0.000000e+00> : vector<16x128xf32>
    %2 = tpu.matmul %0, %1, %cst {dimension_numbers = #tpu.dot_dimension_numbers<[1], [0], [0], [1], [0, 0, 1, 1], [], []>} : vector<16x128xbf16>, vector<128x128xbf16>, vector<16x128xf32> -> vector<16x128xf32>
    %c0_3 = arith.constant 0 : index
    %c0_4 = arith.constant 0 : index
    %3 = vector.load %arg3[%c0_3, %c0_4] : memref<1x128xf32, #tpu.memory_space<vmem>>, vector<1x128xf32>
    %4 = vector.broadcast %3 : vector<1x128xf32> to vector<16x128xf32>
    %5 = arith.addf %2, %4 : vector<16x128xf32>
    %6 = arith.truncf %5 : vector<16x128xf32> to vector<16x128xbf16>
    %c0_5 = arith.constant 0 : index
    %c0_6 = arith.constant 0 : index
    %7 = vector.load %arg4[%c0_5, %c0_6] : memref<16x128xbf16, #tpu.memory_space<vmem>>, vector<16x128xbf16>
    tpu.vector_store %arg4[%c0_5, %c0_6], %6 {strides = array<i32>} : memref<16x128xbf16, #tpu.memory_space<vmem>>, vector<16x128xbf16>,
    return
  }
  func.func @transform_0(%arg0: i32) -> (i32, i32) {
    %c0_i32 = arith.constant 0 : i32
    %c0_i32_0 = arith.constant 0 : i32
    return %arg0, %c0_i32 : i32, i32
  }
  func.func @transform_1(%arg0: i32) -> (i32, i32) {
    %c0_i32 = arith.constant 0 : i32
    %c0_i32_0 = arith.constant 0 : i32
    %c0_i32_1 = arith.constant 0 : i32
    return %c0_i32, %c0_i32_0 : i32, i32
  }
  func.func @transform_2(%arg0: i32) -> (i32, i32) {
    %c0_i32 = arith.constant 0 : i32
    %c0_i32_0 = arith.constant 0 : i32
    %c0_i32_1 = arith.constant 0 : i32
    return %c0_i32, %c0_i32_0 : i32, i32
  }
  func.func @transform_3(%arg0: i32) -> (i32, i32) {
    %c0_i32 = arith.constant 0 : i32
    %c0_i32_0 = arith.constant 0 : i32
    return %arg0, %c0_i32 : i32, i32
  }
}

module attributes {stable_mosaic.version = 11 : i64} {
  func.func @agg_kernel(%arg0: i32, %arg1: i32, %arg2: memref<16x16xbf16, #tpu.memory_space<vmem>>, %arg3: memref<16x128xbf16, #tpu.memory_space<vmem>>, %arg4: memref<1x128xf32, #tpu.memory_space<vmem>>, %arg5: memref<16x128xbf16, #tpu.memory_space<vmem>>, %arg6: memref<16x128xf32, #tpu.memory_space<vmem>>) attributes {dimension_semantics = [#tpu.dimension_semantics<parallel>, #tpu.dimension_semantics<arbitrary>], iteration_bounds = array<i64: 1, 1>, scalar_prefetch = 0 : i64, scratch_operands = 1 : i64, tpu.core_type = #tpu.core_type<tc>, window_params = [{transform_indices = @transform_0, window_bounds = array<i64: 16, 16>}, {transform_indices = @transform_1, window_bounds = array<i64: 16, 128>}, {pipeline_mode = #tpu.pipeline_mode<synchronous>, transform_indices = @transform_2, window_bounds = array<i64: 1, 128>}, {transform_indices = @transform_3, window_bounds = array<i64: 16, 128>}]} {
    %c0_i32 = arith.constant 0 : i32
    %0 = arith.cmpi eq, %arg1, %c0_i32 : i32
    %1 = arith.extui %0 : i1 to i32
    %c0_i32_0 = arith.constant 0 : i32
    %2 = arith.cmpi ne, %1, %c0_i32_0 : i32
    scf.if %2 {
      %cst_10 = arith.constant 0.000000e+00 : f32
      %12 = vector.broadcast %cst_10 : f32 to vector<16x128xf32>
      %c0_11 = arith.constant 0 : index
      %c0_12 = arith.constant 0 : index
      %13 = vector.load %arg6[%c0_11, %c0_12] : memref<16x128xf32, #tpu.memory_space<vmem>>, vector<16x128xf32>
      tpu.vector_store %arg6[%c0_11, %c0_12], %12 {strides = array<i32>} : memref<16x128xf32, #tpu.memory_space<vmem>>, vector<16x128xf32>,
    } else {
    }
    %c0 = arith.constant 0 : index
    %c0_1 = arith.constant 0 : index
    %3 = vector.load %arg6[%c0, %c0_1] : memref<16x128xf32, #tpu.memory_space<vmem>>, vector<16x128xf32>
    %c0_2 = arith.constant 0 : index
    %c0_3 = arith.constant 0 : index
    %4 = vector.load %arg2[%c0_2, %c0_3] : memref<16x16xbf16, #tpu.memory_space<vmem>>, vector<16x16xbf16>
    %c0_4 = arith.constant 0 : index
    %c0_5 = arith.constant 0 : index
    %5 = vector.load %arg3[%c0_4, %c0_5] : memref<16x128xbf16, #tpu.memory_space<vmem>>, vector<16x128xbf16>
    %cst = arith.constant dense<0.000000e+00> : vector<16x128xf32>
    %6 = tpu.matmul %4, %5, %cst {dimension_numbers = #tpu.dot_dimension_numbers<[1], [0], [0], [1], [0, 0, 1, 1], [], []>} : vector<16x16xbf16>, vector<16x128xbf16>, vector<16x128xf32> -> vector<16x128xf32>
    %7 = arith.addf %3, %6 : vector<16x128xf32>
    %c0_6 = arith.constant 0 : index
    %c0_7 = arith.constant 0 : index
    %8 = vector.load %arg6[%c0_6, %c0_7] : memref<16x128xf32, #tpu.memory_space<vmem>>, vector<16x128xf32>
    tpu.vector_store %arg6[%c0_6, %c0_7], %7 {strides = array<i32>} : memref<16x128xf32, #tpu.memory_space<vmem>>, vector<16x128xf32>,
    %c0_i32_8 = arith.constant 0 : i32
    %9 = arith.cmpi eq, %arg1, %c0_i32_8 : i32
    %10 = arith.extui %9 : i1 to i32
    %c0_i32_9 = arith.constant 0 : i32
    %11 = arith.cmpi ne, %10, %c0_i32_9 : i32
    scf.if %11 {
      %c0_10 = arith.constant 0 : index
      %c0_11 = arith.constant 0 : index
      %12 = vector.load %arg6[%c0_10, %c0_11] : memref<16x128xf32, #tpu.memory_space<vmem>>, vector<16x128xf32>
      %c0_12 = arith.constant 0 : index
      %c0_13 = arith.constant 0 : index
      %13 = vector.load %arg4[%c0_12, %c0_13] : memref<1x128xf32, #tpu.memory_space<vmem>>, vector<1x128xf32>
      %14 = vector.broadcast %13 : vector<1x128xf32> to vector<16x128xf32>
      %15 = arith.addf %12, %14 : vector<16x128xf32>
      %16 = arith.truncf %15 : vector<16x128xf32> to vector<16x128xbf16>
      %c0_14 = arith.constant 0 : index
      %c0_15 = arith.constant 0 : index
      %17 = vector.load %arg5[%c0_14, %c0_15] : memref<16x128xbf16, #tpu.memory_space<vmem>>, vector<16x128xbf16>
      tpu.vector_store %arg5[%c0_14, %c0_15], %16 {strides = array<i32>} : memref<16x128xbf16, #tpu.memory_space<vmem>>, vector<16x128xbf16>,
    } else {
    }
    return
  }
  func.func @transform_0(%arg0: i32, %arg1: i32) -> (i32, i32) {
    %c0_i32 = arith.constant 0 : i32
    return %arg0, %arg1 : i32, i32
  }
  func.func @transform_1(%arg0: i32, %arg1: i32) -> (i32, i32) {
    %c0_i32 = arith.constant 0 : i32
    %c0_i32_0 = arith.constant 0 : i32
    return %arg1, %c0_i32 : i32, i32
  }
  func.func @transform_2(%arg0: i32, %arg1: i32) -> (i32, i32) {
    %c0_i32 = arith.constant 0 : i32
    %c0_i32_0 = arith.constant 0 : i32
    %c0_i32_1 = arith.constant 0 : i32
    return %c0_i32, %c0_i32_0 : i32, i32
  }
  func.func @transform_3(%arg0: i32, %arg1: i32) -> (i32, i32) {
    %c0_i32 = arith.constant 0 : i32
    %c0_i32_0 = arith.constant 0 : i32
    return %arg0, %c0_i32 : i32, i32
  }
}

module attributes {stable_mosaic.version = 11 : i64} {
  func.func @linear_kernel(%arg0: i32, %arg1: memref<16x128xbf16, #tpu.memory_space<vmem>>, %arg2: memref<128x128xbf16, #tpu.memory_space<vmem>>, %arg3: memref<1x128xf32, #tpu.memory_space<vmem>>, %arg4: memref<16x128xf32, #tpu.memory_space<vmem>>) attributes {dimension_semantics = [#tpu.dimension_semantics<parallel>], iteration_bounds = array<i64: 1>, scalar_prefetch = 0 : i64, scratch_operands = 0 : i64, tpu.core_type = #tpu.core_type<tc>, window_params = [{transform_indices = @transform_0, window_bounds = array<i64: 16, 128>}, {pipeline_mode = #tpu.pipeline_mode<synchronous>, transform_indices = @transform_1, window_bounds = array<i64: 128, 128>}, {pipeline_mode = #tpu.pipeline_mode<synchronous>, transform_indices = @transform_2, window_bounds = array<i64: 1, 128>}, {transform_indices = @transform_3, window_bounds = array<i64: 16, 128>}]} {
    %c0 = arith.constant 0 : index
    %c0_0 = arith.constant 0 : index
    %0 = vector.load %arg1[%c0, %c0_0] : memref<16x128xbf16, #tpu.memory_space<vmem>>, vector<16x128xbf16>
    %c0_1 = arith.constant 0 : index
    %c0_2 = arith.constant 0 : index
    %1 = vector.load %arg2[%c0_1, %c0_2] : memref<128x128xbf16, #tpu.memory_space<vmem>>, vector<128x128xbf16>
    %cst = arith.constant dense<0.000000e+00> : vector<16x128xf32>
    %2 = tpu.matmul %0, %1, %cst {dimension_numbers = #tpu.dot_dimension_numbers<[1], [0], [0], [1], [0, 0, 1, 1], [], []>} : vector<16x128xbf16>, vector<128x128xbf16>, vector<16x128xf32> -> vector<16x128xf32>
    %c0_3 = arith.constant 0 : index
    %c0_4 = arith.constant 0 : index
    %3 = vector.load %arg3[%c0_3, %c0_4] : memref<1x128xf32, #tpu.memory_space<vmem>>, vector<1x128xf32>
    %4 = vector.broadcast %3 : vector<1x128xf32> to vector<16x128xf32>
    %5 = arith.addf %2, %4 : vector<16x128xf32>
    %6 = arith.negf %5 : vector<16x128xf32>
    %7 = math.exp %6 : vector<16x128xf32>
    %cst_5 = arith.constant 1.000000e+00 : f32
    %8 = vector.broadcast %cst_5 : f32 to vector<16x128xf32>
    %9 = arith.addf %8, %7 : vector<16x128xf32>
    %10 = arith.divf %8, %9 : vector<16x128xf32>
    %c0_6 = arith.constant 0 : index
    %c0_7 = arith.constant 0 : index
    %11 = vector.load %arg4[%c0_6, %c0_7] : memref<16x128xf32, #tpu.memory_space<vmem>>, vector<16x128xf32>
    tpu.vector_store %arg4[%c0_6, %c0_7], %10 {strides = array<i32>} : memref<16x128xf32, #tpu.memory_space<vmem>>, vector<16x128xf32>,
    return
  }
  func.func @transform_0(%arg0: i32) -> (i32, i32) {
    %c0_i32 = arith.constant 0 : i32
    %c0_i32_0 = arith.constant 0 : i32
    return %arg0, %c0_i32 : i32, i32
  }
  func.func @transform_1(%arg0: i32) -> (i32, i32) {
    %c0_i32 = arith.constant 0 : i32
    %c0_i32_0 = arith.constant 0 : i32
    %c0_i32_1 = arith.constant 0 : i32
    return %c0_i32, %c0_i32_0 : i32, i32
  }
  func.func @transform_2(%arg0: i32) -> (i32, i32) {
    %c0_i32 = arith.constant 0 : i32
    %c0_i32_0 = arith.constant 0 : i32
    %c0_i32_1 = arith.constant 0 : i32
    return %c0_i32, %c0_i32_0 : i32, i32
  }
  func.func @transform_3(%arg0: i32) -> (i32, i32) {
    %c0_i32 = arith.constant 0 : i32
    %c0_i32_0 = arith.constant 0 : i32
    return %arg0, %c0_i32 : i32, i32
  }
}

</mosaic_0001>

<llo_original>
// kernel: simple_gcn_forward.6
$region0: #{simple_gcn_forward.6}
  #allocation0 [shape = 'u32[]', space=smem, size = 0x4, offset = 0x4, fixed_abs, tag = 'smem constant byte address 0x4 - core index']
  #allocation1 [shape = 'u32[144,128]{1,0:T(1,128)}', space=vmem, size = 0x12000, scoped, tag = 'internal scratch']
  #allocation2 [shape = 'f32[16,128]{1,0:T(8,128)}', space=vmem, size = 0x2000, scoped, tag = 'scratch operand']
  %s0 = inlined_call_operand.vmem [shape: bf16[16,16], index: 0, kind: input, shape index: {}]
  %s1 = inlined_call_operand.vmem [shape: bf16[16,128], index: 1, kind: input, shape index: {}]
  %s2 = inlined_call_operand.vmem [shape: f32[1,128], index: 2, kind: input, shape index: {}]
  %s3 = inlined_call_operand.vmem [shape: bf16[16,128], index: 3, kind: output, shape index: {}]
  %s4 = sld [smem:[#allocation0]]
  $region30: #{simple_gcn_forward.6} parent=0
    _
  %s6 = ssub.s32 1, %s4
  %s7 = scalar_select 0, %s6, %s4
  // Predicated region
  $region2: #{simple_gcn_forward.6} parent=0 // pred_check
    _
  $region3: #{simple_gcn_forward.6} parent=0 // pred_check_branch
    %9 = sbr.rel (0) target = $region5
  $region4: #{simple_gcn_forward.6} parent=0 // pred_region
    _
  $region5: #{simple_gcn_forward.6} parent=0 // pred_fallthru
    _
  // Predicated region
  $region6: #{simple_gcn_forward.6} parent=0 // pred_check
    _
  $region7: #{simple_gcn_forward.6} parent=0 // pred_check_branch
    %11 = sbr.rel (0) target = $region9
  $region8: #{simple_gcn_forward.6} parent=0 // pred_region
    _
  $region9: #{simple_gcn_forward.6} parent=0 // pred_fallthru
    _
  // Predicated region
  $region10: #{simple_gcn_forward.6} parent=0 // pred_check
    _
  $region11: #{simple_gcn_forward.6} parent=0 // pred_check_branch
    %13 = sbr.rel (0) target = $region13
  $region12: #{simple_gcn_forward.6} parent=0 // pred_region
    _
  $region13: #{simple_gcn_forward.6} parent=0 // pred_fallthru
    _
  %p15 = scmp.eq.s32.totalorder 0, 0
  // Predicated region
  $region14: #{simple_gcn_forward.6} parent=0 // pred_check
    %p16 = pneg %p15
  $region15: #{simple_gcn_forward.6} parent=0 // pred_check_branch
    %18 = sbr.rel (%p16) target = $region17
  $region16: #{simple_gcn_forward.6} parent=0 // pred_region
    %19 = vst [vmem:[#allocation2] sm:$0xff] 0.0
    %20 = vst [vmem:[#allocation2 + $0x8] sm:$0xff] 0.0
  $region17: #{simple_gcn_forward.6} parent=0 // pred_fallthru
    _
  %v21 = vld [vmem:[#allocation2] sm:$0xff]
  %v22 = vld [vmem:[#allocation2 + $0x8] sm:$0xff]
  %v23 = vld [vmem:[%s0] sm:$0xf]
  %v24 = vld [vmem:[%s0 + $0x4] sm:$0xf]
  %v25 = vld [vmem:[%s1] sm:$0xf]
  %v26 = vld [vmem:[%s1 + $0x4] sm:$0xf]
  %v29 = vunpack.c.l.b16 %v23
  %v30 = vunpack.c.l.b16 %v24
  %v31 = vpack.c.b16 %v30, %v29
  %v34 = vunpack.c.l.b16 %v25
  %v35 = vunpack.c.l.b16 %v26
  %v36 = vpack.c.b16 %v35, %v34
  %vm38 = vcmask 130048
  %v40 = vsel %vm38, %v31, 0
  %42 = vmatprep.subr.bf16.mxu0 0
  %43 = vmatpush1.bf16.msra.mxu0 0
  %44 = vmatprep.subr.bf16.mxu0 0
  %45 = vmatpush1.bf16.msra.mxu0 0
  %46 = vmatprep.subr.bf16.mxu0 0
  %47 = vmatpush1.bf16.msra.mxu0 0
  %48 = vmatprep.subr.bf16.mxu0 0
  %49 = vmatpush1.bf16.msra.mxu0 0
  %50 = vmatprep.subr.bf16.mxu0 0
  %51 = vmatpush1.bf16.msra.mxu0 0
  %52 = vmatprep.subr.bf16.mxu0 0
  %53 = vmatpush1.bf16.msra.mxu0 0
  %54 = vmatprep.subr.bf16.mxu0 0
  %55 = vmatpush1.bf16.msra.mxu0 0
  %56 = vmatprep.subr.bf16.mxu0 0
  %57 = vmatpush1.bf16.msra.mxu0 %v36
  %58 = vmatprep.subr.bf16.mxu0 0
  %59 = vmatpush2.bf16.msra.mxu0 0
  %60 = vmatprep.subr.bf16.mxu0 0
  %61 = vmatpush2.bf16.msra.mxu0 0
  %62 = vmatprep.subr.bf16.mxu0 0
  %63 = vmatpush2.bf16.msra.mxu0 0
  %64 = vmatprep.subr.bf16.mxu0 0
  %65 = vmatpush2.bf16.msra.mxu0 0
  %66 = vmatprep.subr.bf16.mxu0 0
  %67 = vmatpush2.bf16.msra.mxu0 0
  %68 = vmatprep.subr.bf16.mxu0 0
  %69 = vmatpush2.bf16.msra.mxu0 0
  %70 = vmatprep.subr.bf16.mxu0 0
  %71 = vmatpush2.bf16.msra.mxu0 0
  %72 = vmatprep.subr.bf16.mxu0 0
  %73 = vmatpush2.bf16.msra.mxu0 0
  %74 = vmatprep.mubr.bf16.mxu0 0
  %75 = vmatmul.mubr.bf16.gmra.mxu0 %v40
  %v76 = vpop.f32.mrf.mxu0
  %v77 = vadd.f32 0.0, %v76
  %v78 = vpop.f32.mrf.mxu0
  %v79 = vpop.f32.mrf.mxu0
  %v80 = vadd.f32 0.0, %v79
  %v81 = vpop.f32.mrf.mxu0
  %82 = vdwg.mxu0
  %v83 = vadd.f32 %v21, %v77
  %v84 = vadd.f32 %v22, %v80
  %85 = vst [vmem:[#allocation2] sm:$0xff] %v83
  %86 = vst [vmem:[#allocation2 + $0x8] sm:$0xff] %v84
  // Predicated region
  $region18: #{simple_gcn_forward.6} parent=0 // pred_check
    %p87 = pneg %p15
  $region19: #{simple_gcn_forward.6} parent=0 // pred_check_branch
    %89 = sbr.rel (%p87) target = $region21
  $region20: #{simple_gcn_forward.6} parent=0 // pred_region
    %v90 = vld [vmem:[#allocation2] sm:$0xff]
    %v91 = vld [vmem:[#allocation2 + $0x8] sm:$0xff]
    %v92 = vld [vmem:[%s2] sm:$0x1]
    %v94 = vlaneseq
    %v95 = vshrl.u32 %v94, 7
    %v96 = vsub.s32 0, %v95
    %v97 = vrot.slane %v92, %v96
    %v99 = vadd.f32 %v90, %v97
    %v100 = vadd.f32 %v91, %v97
    %v101 = vpack.c.bf16 %v100, %v99
    %v103 = vunpack.c.l.b16 %v101
    %v104 = vunpack.c.h.b16 %v101
    %v105 = vpack.c.b16 %v103, %v103
    %v106 = vpack.c.b16 %v104, %v104
    %109 = vst [vmem:[%s3] sm:$0xf] %v105
    %110 = vst [vmem:[%s3 + $0x4] sm:$0xf] %v106
  $region21: #{simple_gcn_forward.6} parent=0 // pred_fallthru
    _
  // Predicated region
  $region22: #{simple_gcn_forward.6} parent=0 // pred_check
    _
  $region23: #{simple_gcn_forward.6} parent=0 // pred_check_branch
    %112 = sbr.rel (0) target = $region25
  $region24: #{simple_gcn_forward.6} parent=0 // pred_region
    _
  $region25: #{simple_gcn_forward.6} parent=0 // pred_fallthru
    _
  // Predicated region
  $region26: #{simple_gcn_forward.6} parent=0 // pred_check
    _
  $region27: #{simple_gcn_forward.6} parent=0 // pred_check_branch
    %114 = sbr.rel (0) target = $region29
  $region28: #{simple_gcn_forward.6} parent=0 // pred_region
    _
  $region29: #{simple_gcn_forward.6} parent=0 // pred_fallthru
    _

// kernel: simple_gcn_forward.5
$region0: #{simple_gcn_forward.5}
  #allocation0 [shape = 'u32[]', space=smem, size = 0x4, offset = 0x4, fixed_abs, tag = 'smem constant byte address 0x4 - core index']
  #allocation1 [shape = 'u32[144,128]{1,0:T(1,128)}', space=vmem, size = 0x12000, scoped, tag = 'internal scratch']
  %s0 = inlined_call_operand.vmem [shape: bf16[16,128], index: 0, kind: input, shape index: {}]
  %s1 = inlined_call_operand.vmem [shape: bf16[128,128], index: 1, kind: input, shape index: {}]
  %s2 = inlined_call_operand.vmem [shape: f32[1,128], index: 2, kind: input, shape index: {}]
  %s3 = inlined_call_operand.vmem [shape: bf16[16,128], index: 3, kind: output, shape index: {}]
  %s4 = sld [smem:[#allocation0]]
  $region22: #{simple_gcn_forward.5} parent=0
    _
  %s6 = ssub.s32 1, %s4
  %s7 = scalar_select 0, %s6, %s4
  // Predicated region
  $region2: #{simple_gcn_forward.5} parent=0 // pred_check
    _
  $region3: #{simple_gcn_forward.5} parent=0 // pred_check_branch
    %9 = sbr.rel (0) target = $region5
  $region4: #{simple_gcn_forward.5} parent=0 // pred_region
    _
  $region5: #{simple_gcn_forward.5} parent=0 // pred_fallthru
    _
  // Predicated region
  $region6: #{simple_gcn_forward.5} parent=0 // pred_check
    _
  $region7: #{simple_gcn_forward.5} parent=0 // pred_check_branch
    %11 = sbr.rel (0) target = $region9
  $region8: #{simple_gcn_forward.5} parent=0 // pred_region
    _
  $region9: #{simple_gcn_forward.5} parent=0 // pred_fallthru
    _
  // Predicated region
  $region10: #{simple_gcn_forward.5} parent=0 // pred_check
    _
  $region11: #{simple_gcn_forward.5} parent=0 // pred_check_branch
    %13 = sbr.rel (0) target = $region13
  $region12: #{simple_gcn_forward.5} parent=0 // pred_region
    _
  $region13: #{simple_gcn_forward.5} parent=0 // pred_fallthru
    _
  %v15 = vld [vmem:[%s0] sm:$0xf]
  %v16 = vld [vmem:[%s0 + $0x4] sm:$0xf]
  %v17 = vld [vmem:[%s1] sm:$0xf]
  %v18 = vld [vmem:[%s1 + $0x4] sm:$0xf]
  %v19 = vld [vmem:[%s1 + $0x8] sm:$0xf]
  %v20 = vld [vmem:[%s1 + $0xc] sm:$0xf]
  %v21 = vld [vmem:[%s1 + $0x10] sm:$0xf]
  %v22 = vld [vmem:[%s1 + $0x14] sm:$0xf]
  %v23 = vld [vmem:[%s1 + $0x18] sm:$0xf]
  %v24 = vld [vmem:[%s1 + $0x1c] sm:$0xf]
  %v25 = vld [vmem:[%s1 + $0x20] sm:$0xf]
  %v26 = vld [vmem:[%s1 + $0x24] sm:$0xf]
  %v27 = vld [vmem:[%s1 + $0x28] sm:$0xf]
  %v28 = vld [vmem:[%s1 + $0x2c] sm:$0xf]
  %v29 = vld [vmem:[%s1 + $0x30] sm:$0xf]
  %v30 = vld [vmem:[%s1 + $0x34] sm:$0xf]
  %v31 = vld [vmem:[%s1 + $0x38] sm:$0xf]
  %v32 = vld [vmem:[%s1 + $0x3c] sm:$0xf]
  %v33 = vld [vmem:[%s2] sm:$0x1]
  %v35 = vlaneseq
  %v36 = vshrl.u32 %v35, 7
  %v37 = vsub.s32 0, %v36
  %v38 = vrot.slane %v33, %v37
  %v42 = vunpack.c.l.b16 %v15
  %v43 = vunpack.c.l.b16 %v16
  %v44 = vpack.c.b16 %v43, %v42
  %v62 = vunpack.c.l.b16 %v17
  %v63 = vunpack.c.l.b16 %v18
  %v64 = vunpack.c.l.b16 %v19
  %v65 = vunpack.c.l.b16 %v20
  %v66 = vunpack.c.l.b16 %v21
  %v67 = vunpack.c.l.b16 %v22
  %v68 = vunpack.c.l.b16 %v23
  %v69 = vunpack.c.l.b16 %v24
  %v70 = vunpack.c.l.b16 %v25
  %v71 = vunpack.c.l.b16 %v26
  %v72 = vunpack.c.l.b16 %v27
  %v73 = vunpack.c.l.b16 %v28
  %v74 = vunpack.c.l.b16 %v29
  %v75 = vunpack.c.l.b16 %v30
  %v76 = vunpack.c.l.b16 %v31
  %v77 = vunpack.c.l.b16 %v32
  %v78 = vpack.c.b16 %v63, %v62
  %v79 = vpack.c.b16 %v65, %v64
  %v80 = vpack.c.b16 %v67, %v66
  %v81 = vpack.c.b16 %v69, %v68
  %v82 = vpack.c.b16 %v71, %v70
  %v83 = vpack.c.b16 %v73, %v72
  %v84 = vpack.c.b16 %v75, %v74
  %v85 = vpack.c.b16 %v77, %v76
  %94 = vmatprep.subr.bf16.mxu0 0
  %95 = vmatpush1.bf16.msra.mxu0 %v85
  %96 = vmatprep.subr.bf16.mxu0 0
  %97 = vmatpush1.bf16.msra.mxu0 %v84
  %98 = vmatprep.subr.bf16.mxu0 0
  %99 = vmatpush1.bf16.msra.mxu0 %v83
  %100 = vmatprep.subr.bf16.mxu0 0
  %101 = vmatpush1.bf16.msra.mxu0 %v82
  %102 = vmatprep.subr.bf16.mxu0 0
  %103 = vmatpush1.bf16.msra.mxu0 %v81
  %104 = vmatprep.subr.bf16.mxu0 0
  %105 = vmatpush1.bf16.msra.mxu0 %v80
  %106 = vmatprep.subr.bf16.mxu0 0
  %107 = vmatpush1.bf16.msra.mxu0 %v79
  %108 = vmatprep.subr.bf16.mxu0 0
  %109 = vmatpush1.bf16.msra.mxu0 %v78
  %110 = vmatprep.subr.bf16.mxu0 0
  %111 = vmatpush2.bf16.msra.mxu0 0
  %112 = vmatprep.subr.bf16.mxu0 0
  %113 = vmatpush2.bf16.msra.mxu0 0
  %114 = vmatprep.subr.bf16.mxu0 0
  %115 = vmatpush2.bf16.msra.mxu0 0
  %116 = vmatprep.subr.bf16.mxu0 0
  %117 = vmatpush2.bf16.msra.mxu0 0
  %118 = vmatprep.subr.bf16.mxu0 0
  %119 = vmatpush2.bf16.msra.mxu0 0
  %120 = vmatprep.subr.bf16.mxu0 0
  %121 = vmatpush2.bf16.msra.mxu0 0
  %122 = vmatprep.subr.bf16.mxu0 0
  %123 = vmatpush2.bf16.msra.mxu0 0
  %124 = vmatprep.subr.bf16.mxu0 0
  %125 = vmatpush2.bf16.msra.mxu0 0
  %126 = vmatprep.mubr.bf16.mxu0 0
  %127 = vmatmul.mubr.bf16.gmra.mxu0 %v44
  %v128 = vpop.f32.mrf.mxu0
  %v129 = vadd.f32 %v38, %v128
  %v130 = vpop.f32.mrf.mxu0
  %v131 = vpop.f32.mrf.mxu0
  %v132 = vadd.f32 %v38, %v131
  %v133 = vpop.f32.mrf.mxu0
  %134 = vdwg.mxu0
  %v135 = vpack.c.bf16 %v132, %v129
  %v137 = vunpack.c.l.b16 %v135
  %v138 = vunpack.c.h.b16 %v135
  %v139 = vpack.c.b16 %v137, %v137
  %v140 = vpack.c.b16 %v138, %v138
  %143 = vst [vmem:[%s3] sm:$0xf] %v139
  %144 = vst [vmem:[%s3 + $0x4] sm:$0xf] %v140
  // Predicated region
  $region14: #{simple_gcn_forward.5} parent=0 // pred_check
    _
  $region15: #{simple_gcn_forward.5} parent=0 // pred_check_branch
    %146 = sbr.rel (0) target = $region17
  $region16: #{simple_gcn_forward.5} parent=0 // pred_region
    _
  $region17: #{simple_gcn_forward.5} parent=0 // pred_fallthru
    _
  // Predicated region
  $region18: #{simple_gcn_forward.5} parent=0 // pred_check
    _
  $region19: #{simple_gcn_forward.5} parent=0 // pred_check_branch
    %148 = sbr.rel (0) target = $region21
  $region20: #{simple_gcn_forward.5} parent=0 // pred_region
    _
  $region21: #{simple_gcn_forward.5} parent=0 // pred_fallthru
    _

// kernel: simple_gcn_forward.9
$region0: #{simple_gcn_forward.9}
  #allocation0 [shape = 'u32[]', space=smem, size = 0x4, offset = 0x4, fixed_abs, tag = 'smem constant byte address 0x4 - core index']
  #allocation1 [shape = 'u32[144,128]{1,0:T(1,128)}', space=vmem, size = 0x12000, scoped, tag = 'internal scratch']
  %s0 = inlined_call_operand.vmem [shape: bf16[16,128], index: 0, kind: input, shape index: {}]
  %s1 = inlined_call_operand.vmem [shape: bf16[128,128], index: 1, kind: input, shape index: {}]
  %s2 = inlined_call_operand.vmem [shape: f32[1,128], index: 2, kind: input, shape index: {}]
  %s3 = inlined_call_operand.vmem [shape: f32[16,128], index: 3, kind: output, shape index: {}]
  %s4 = sld [smem:[#allocation0]]
  $region22: #{simple_gcn_forward.9} parent=0
    _
  %s6 = ssub.s32 1, %s4
  %s7 = scalar_select 0, %s6, %s4
  // Predicated region
  $region2: #{simple_gcn_forward.9} parent=0 // pred_check
    _
  $region3: #{simple_gcn_forward.9} parent=0 // pred_check_branch
    %9 = sbr.rel (0) target = $region5
  $region4: #{simple_gcn_forward.9} parent=0 // pred_region
    _
  $region5: #{simple_gcn_forward.9} parent=0 // pred_fallthru
    _
  // Predicated region
  $region6: #{simple_gcn_forward.9} parent=0 // pred_check
    _
  $region7: #{simple_gcn_forward.9} parent=0 // pred_check_branch
    %11 = sbr.rel (0) target = $region9
  $region8: #{simple_gcn_forward.9} parent=0 // pred_region
    _
  $region9: #{simple_gcn_forward.9} parent=0 // pred_fallthru
    _
  // Predicated region
  $region10: #{simple_gcn_forward.9} parent=0 // pred_check
    _
  $region11: #{simple_gcn_forward.9} parent=0 // pred_check_branch
    %13 = sbr.rel (0) target = $region13
  $region12: #{simple_gcn_forward.9} parent=0 // pred_region
    _
  $region13: #{simple_gcn_forward.9} parent=0 // pred_fallthru
    _
  %v15 = vld [vmem:[%s0] sm:$0xf]
  %v16 = vld [vmem:[%s0 + $0x4] sm:$0xf]
  %v17 = vld [vmem:[%s1] sm:$0xf]
  %v18 = vld [vmem:[%s1 + $0x4] sm:$0xf]
  %v19 = vld [vmem:[%s1 + $0x8] sm:$0xf]
  %v20 = vld [vmem:[%s1 + $0xc] sm:$0xf]
  %v21 = vld [vmem:[%s1 + $0x10] sm:$0xf]
  %v22 = vld [vmem:[%s1 + $0x14] sm:$0xf]
  %v23 = vld [vmem:[%s1 + $0x18] sm:$0xf]
  %v24 = vld [vmem:[%s1 + $0x1c] sm:$0xf]
  %v25 = vld [vmem:[%s1 + $0x20] sm:$0xf]
  %v26 = vld [vmem:[%s1 + $0x24] sm:$0xf]
  %v27 = vld [vmem:[%s1 + $0x28] sm:$0xf]
  %v28 = vld [vmem:[%s1 + $0x2c] sm:$0xf]
  %v29 = vld [vmem:[%s1 + $0x30] sm:$0xf]
  %v30 = vld [vmem:[%s1 + $0x34] sm:$0xf]
  %v31 = vld [vmem:[%s1 + $0x38] sm:$0xf]
  %v32 = vld [vmem:[%s1 + $0x3c] sm:$0xf]
  %v33 = vld [vmem:[%s2] sm:$0x1]
  %v35 = vlaneseq
  %v36 = vshrl.u32 %v35, 7
  %v37 = vsub.s32 0, %v36
  %v38 = vrot.slane %v33, %v37
  %v42 = vunpack.c.l.b16 %v15
  %v43 = vunpack.c.l.b16 %v16
  %v44 = vpack.c.b16 %v43, %v42
  %v62 = vunpack.c.l.b16 %v17
  %v63 = vunpack.c.l.b16 %v18
  %v64 = vunpack.c.l.b16 %v19
  %v65 = vunpack.c.l.b16 %v20
  %v66 = vunpack.c.l.b16 %v21
  %v67 = vunpack.c.l.b16 %v22
  %v68 = vunpack.c.l.b16 %v23
  %v69 = vunpack.c.l.b16 %v24
  %v70 = vunpack.c.l.b16 %v25
  %v71 = vunpack.c.l.b16 %v26
  %v72 = vunpack.c.l.b16 %v27
  %v73 = vunpack.c.l.b16 %v28
  %v74 = vunpack.c.l.b16 %v29
  %v75 = vunpack.c.l.b16 %v30
  %v76 = vunpack.c.l.b16 %v31
  %v77 = vunpack.c.l.b16 %v32
  %v78 = vpack.c.b16 %v63, %v62
  %v79 = vpack.c.b16 %v65, %v64
  %v80 = vpack.c.b16 %v67, %v66
  %v81 = vpack.c.b16 %v69, %v68
  %v82 = vpack.c.b16 %v71, %v70
  %v83 = vpack.c.b16 %v73, %v72
  %v84 = vpack.c.b16 %v75, %v74
  %v85 = vpack.c.b16 %v77, %v76
  %94 = vmatprep.subr.bf16.mxu0 0
  %95 = vmatpush1.bf16.msra.mxu0 %v85
  %96 = vmatprep.subr.bf16.mxu0 0
  %97 = vmatpush1.bf16.msra.mxu0 %v84
  %98 = vmatprep.subr.bf16.mxu0 0
  %99 = vmatpush1.bf16.msra.mxu0 %v83
  %100 = vmatprep.subr.bf16.mxu0 0
  %101 = vmatpush1.bf16.msra.mxu0 %v82
  %102 = vmatprep.subr.bf16.mxu0 0
  %103 = vmatpush1.bf16.msra.mxu0 %v81
  %104 = vmatprep.subr.bf16.mxu0 0
  %105 = vmatpush1.bf16.msra.mxu0 %v80
  %106 = vmatprep.subr.bf16.mxu0 0
  %107 = vmatpush1.bf16.msra.mxu0 %v79
  %108 = vmatprep.subr.bf16.mxu0 0
  %109 = vmatpush1.bf16.msra.mxu0 %v78
  %110 = vmatprep.subr.bf16.mxu0 0
  %111 = vmatpush2.bf16.msra.mxu0 0
  %112 = vmatprep.subr.bf16.mxu0 0
  %113 = vmatpush2.bf16.msra.mxu0 0
  %114 = vmatprep.subr.bf16.mxu0 0
  %115 = vmatpush2.bf16.msra.mxu0 0
  %116 = vmatprep.subr.bf16.mxu0 0
  %117 = vmatpush2.bf16.msra.mxu0 0
  %118 = vmatprep.subr.bf16.mxu0 0
  %119 = vmatpush2.bf16.msra.mxu0 0
  %120 = vmatprep.subr.bf16.mxu0 0
  %121 = vmatpush2.bf16.msra.mxu0 0
  %122 = vmatprep.subr.bf16.mxu0 0
  %123 = vmatpush2.bf16.msra.mxu0 0
  %124 = vmatprep.subr.bf16.mxu0 0
  %125 = vmatpush2.bf16.msra.mxu0 0
  %126 = vmatprep.mubr.bf16.mxu0 0
  %127 = vmatmul.mubr.bf16.gmra.mxu0 %v44
  %v128 = vpop.f32.mrf.mxu0
  %v129 = vadd.f32 %v38, %v128
  %v130 = vpop.f32.mrf.mxu0
  %v131 = vpop.f32.mrf.mxu0
  %v132 = vadd.f32 %v38, %v131
  %v133 = vpop.f32.mrf.mxu0
  %134 = vdwg.mxu0
  %v135 = vxor.u32 %v129, 2147483648
  %v136 = vxor.u32 %v132, 2147483648
  %v137 = vmul.f32 %v135, 1.442695
  %v138 = vpow.pop %v137
  %v139 = vmul.f32 %v136, 1.442695
  %v140 = vpow.pop %v139
  %v141 = vadd.f32 %v138, 1.0
  %v142 = vadd.f32 %v140, 1.0
  %v143 = vrcp.pop %v141
  %v144 = vmul.f32 1.0, %v143
  %v145 = vrcp.pop %v142
  %v146 = vmul.f32 1.0, %v145
  %147 = vst [vmem:[%s3] sm:$0xff] %v144
  %148 = vst [vmem:[%s3 + $0x8] sm:$0xff] %v146
  // Predicated region
  $region14: #{simple_gcn_forward.9} parent=0 // pred_check
    _
  $region15: #{simple_gcn_forward.9} parent=0 // pred_check_branch
    %150 = sbr.rel (0) target = $region17
  $region16: #{simple_gcn_forward.9} parent=0 // pred_region
    _
  $region17: #{simple_gcn_forward.9} parent=0 // pred_fallthru
    _
  // Predicated region
  $region18: #{simple_gcn_forward.9} parent=0 // pred_check
    _
  $region19: #{simple_gcn_forward.9} parent=0 // pred_check_branch
    %152 = sbr.rel (0) target = $region21
  $region20: #{simple_gcn_forward.9} parent=0 // pred_region
    _
  $region21: #{simple_gcn_forward.9} parent=0 // pred_fallthru
    _

</llo_original>
